<compile_context>
chip_gen: v6e
topology: v6e:2x2x1
jax: 0.10.0
libtpu: 0.0.40
codegen_flags: <defaults>
</compile_context>

<pallas_src>
import functools

import jax
import jax.numpy as jnp
from jax.experimental import pallas as pl
from jax.experimental.pallas import tpu as pltpu

EPS = 1e-5


def _round_up(a, m):
    return ((a + m - 1) // m) * m


def _prenorm_kernel(x_ref, g_ref, b_ref, w_ref, bias_ref, o_ref, *, true_d):
    # x_ref: (tile_rows, D_pad) block of the flattened (zero-padded) input.
    x = x_ref[...].astype(jnp.float32)
    d_pad = x.shape[-1]
    inv_d = 1.0 / float(true_d)

    # LayerNorm over the last axis (biased variance + eps inside the sqrt,
    # exactly like torch.nn.LayerNorm).  Padded feature columns are zero, so
    # the sums only need a mask for the *centered* values.
    mean = jnp.sum(x, axis=-1, keepdims=True) * inv_d
    if true_d == d_pad:
        centered = x - mean
    else:
        col = jax.lax.broadcasted_iota(jnp.int32, x.shape, 1)
        centered = jnp.where(col < true_d, x - mean, 0.0)
    var = jnp.sum(centered * centered, axis=-1, keepdims=True) * inv_d
    xn = centered * jax.lax.rsqrt(var + EPS)

    # Elementwise affine (gamma, beta broadcast over rows) -- kept in f32.
    xn = xn * g_ref[...].astype(jnp.float32) + b_ref[...].astype(jnp.float32)

    # fn == Linear(dim, dim_out): fused MXU matmul + bias.
    # Operands cast to W's dtype (bf16 by default), accumulation in f32.
    y = jnp.dot(xn.astype(w_ref.dtype), w_ref[...],
                preferred_element_type=jnp.float32)
    o_ref[...] = (y + bias_ref[...].astype(jnp.float32)).astype(o_ref.dtype)


def prenorm_linear(x, gamma, beta, w, bias, *,
                   tile_rows=256, matmul_dtype=jnp.bfloat16):
    """x: (B, S, D) -> (B, S, D_out)   via  Linear(LayerNorm(x))."""
    B, S, D = x.shape
    D_out = w.shape[1]
    R = B * S

    # Lane-dense feature dims (multiples of 128), generous row tile.
    D_pad = _round_up(D, 128)
    D_out_pad = _round_up(D_out, 128)
    tile_rows = _round_up(max(tile_rows, 8), 8)
    tile = min(tile_rows, _round_up(R, 8))
    R_pad = _round_up(R, tile)

    x2 = x.reshape(R, D)
    if R_pad != R or D_pad != D:
        x2 = jnp.pad(x2, ((0, R_pad - R), (0, D_pad - D)))
    g2 = jnp.pad(gamma, (0, D_pad - D)).reshape(1, D_pad).astype(jnp.float32)
    b2 = jnp.pad(beta, (0, D_pad - D)).reshape(1, D_pad).astype(jnp.float32)
    # Pre-cast W to the matmul dtype (halves DMA / VMEM for bf16).
    w2 = jnp.pad(w, ((0, D_pad - D), (0, D_out_pad - D_out))).astype(matmul_dtype)
    bias2 = jnp.pad(bias, (0, D_out_pad - D_out)).reshape(1, D_out_pad).astype(jnp.float32)

    # VMEM budget (everything double-buffered by the default pipeline),
    # with headroom, capped at v7x's 64 MiB physical VMEM.
    itemsize = jnp.dtype(matmul_dtype).itemsize
    bytes_tiles = tile * D_pad * 4 + tile * D_out_pad * 4
    bytes_params = D_pad * D_out_pad * itemsize + 2 * D_pad * 4 + D_out_pad * 4
    vmem_need = 2 * (bytes_tiles + bytes_params)
    vmem_limit = int(min(max(int(vmem_need * 1.5) + (4 << 20), 16 << 20), 64 << 20))

    # NOTE: gamma/beta/W/bias are grid-invariant; pinning them single-buffered
    # (pipeline_mode=pl.Buffered(1)) would free more VMEM for bigger row tiles
    # on v7x, at the cost of relying on newer pipeline_mode plumbing.
    out = pl.pallas_call(
        functools.partial(_prenorm_kernel, true_d=D),
        out_shape=jax.ShapeDtypeStruct((R_pad, D_out_pad), x.dtype),
        grid_spec=pltpu.PrefetchScalarGridSpec(
            num_scalar_prefetch=0,
            grid=(R_pad // tile,),
            in_specs=[
                pl.BlockSpec((tile, D_pad), lambda i: (i, 0)),       # x rows
                pl.BlockSpec((1, D_pad), lambda i: (0, 0)),          # gamma
                pl.BlockSpec((1, D_pad), lambda i: (0, 0)),          # beta
                pl.BlockSpec((D_pad, D_out_pad), lambda i: (0, 0)),  # W (bf16)
                pl.BlockSpec((1, D_out_pad), lambda i: (0, 0)),      # bias
            ],
            out_specs=pl.BlockSpec((tile, D_out_pad), lambda i: (i, 0)),
        ),
        compiler_params=pltpu.CompilerParams(
            dimension_semantics=("parallel",),
            vmem_limit_bytes=vmem_limit,
        ),
    )(x2, g2, b2, w2, bias2)

    return out[:R, :D_out].reshape(B, S, D_out)


def _reference(x, gamma, beta, w, bias, matmul_dtype=jnp.float32):
    xf = x.astype(jnp.float32)
    mean = jnp.mean(xf, axis=-1, keepdims=True)
    var = jnp.mean((xf - mean) ** 2, axis=-1, keepdims=True)
    xn = (xf - mean) * jax.lax.rsqrt(var + EPS)
    xn = xn * gamma + beta
    y = jnp.dot(xn.astype(matmul_dtype), w.astype(matmul_dtype),
                preferred_element_type=jnp.float32)
    return y + bias


if __name__ == "__main__":
    key = jax.random.PRNGKey(0)
    B, S, D, D_out = 2, 8, 32, 32

    kx, kg, kb, kw, kbi = jax.random.split(key, 5)
    x = jax.random.normal(kx, (B, S, D), dtype=jnp.float32)
    # deterministic "parameters" (synthetic, not a checkpoint load)
    gamma = 1.0 + 0.1 * jax.random.normal(kg, (D,), dtype=jnp.float32)
    beta = 0.1 * jax.random.normal(kb, (D,), dtype=jnp.float32)
    w = jax.random.normal(kw, (D, D_out), dtype=jnp.float32) / jnp.sqrt(D)
    bias = 0.1 * jax.random.normal(kbi, (D_out,), dtype=jnp.float32)

    out = prenorm_linear(x, gamma, beta, w, bias)
    out = jax.block_until_ready(out)
    assert out.shape == (B, S, D_out)

    # Tight check vs a reference that mirrors the kernel's precision path
    # (f32 LayerNorm, bf16 matmul operands, f32 accumulation).
    ref_bf16 = _reference(x, gamma, beta, w, bias, matmul_dtype=jnp.bfloat16)
    assert jnp.allclose(out, ref_bf16, atol=1e-2, rtol=1e-2), \
        "mismatch vs bf16-matmul reference"

    # Looser semantic check vs the pure-f32 PreNorm+Linear reference.
    ref_f32 = _reference(x, gamma, beta, w, bias, matmul_dtype=jnp.float32)
    assert jnp.allclose(out, ref_f32, atol=5e-2, rtol=5e-2), \
        "mismatch vs f32 reference"

    print("KERNEL_OK")
</pallas_src>

<mosaic_0001>
module attributes {stable_mosaic.version = 11 : i64} {
  func.func @_prenorm_kernel(%arg0: i32, %arg1: memref<16x128xf32, #tpu.memory_space<vmem>>, %arg2: memref<1x128xf32, #tpu.memory_space<vmem>>, %arg3: memref<1x128xf32, #tpu.memory_space<vmem>>, %arg4: memref<128x128xbf16, #tpu.memory_space<vmem>>, %arg5: memref<1x128xf32, #tpu.memory_space<vmem>>, %arg6: memref<16x128xf32, #tpu.memory_space<vmem>>) attributes {dimension_semantics = [#tpu.dimension_semantics<parallel>], iteration_bounds = array<i64: 1>, scalar_prefetch = 0 : i64, scratch_operands = 0 : i64, tpu.core_type = #tpu.core_type<tc>, window_params = [{transform_indices = @transform_0, window_bounds = array<i64: 16, 128>}, {pipeline_mode = #tpu.pipeline_mode<synchronous>, transform_indices = @transform_1, window_bounds = array<i64: 1, 128>}, {pipeline_mode = #tpu.pipeline_mode<synchronous>, transform_indices = @transform_2, window_bounds = array<i64: 1, 128>}, {pipeline_mode = #tpu.pipeline_mode<synchronous>, transform_indices = @transform_3, window_bounds = array<i64: 128, 128>}, {pipeline_mode = #tpu.pipeline_mode<synchronous>, transform_indices = @transform_4, window_bounds = array<i64: 1, 128>}, {transform_indices = @transform_5, window_bounds = array<i64: 16, 128>}]} {
    %c0 = arith.constant 0 : index
    %c0_0 = arith.constant 0 : index
    %0 = vector.load %arg1[%c0, %c0_0] : memref<16x128xf32, #tpu.memory_space<vmem>>, vector<16x128xf32>
    %cst = arith.constant dense<0.000000e+00> : vector<16xf32>
    %1 = vector.multi_reduction <add>, %0, %cst [1] : vector<16x128xf32> to vector<16xf32>
    %2 = vector.shape_cast %1 : vector<16xf32> to vector<16x1xf32>
    %cst_1 = arith.constant 3.125000e-02 : f32
    %3 = vector.broadcast %cst_1 : f32 to vector<16x1xf32>
    %4 = arith.mulf %2, %3 : vector<16x1xf32>
    %5 = tpu.iota {dimensions = array<i32: 1>} : vector<16x128xi32>
    %c32_i32 = arith.constant 32 : i32
    %6 = vector.broadcast %c32_i32 : i32 to vector<16x128xi32>
    %7 = arith.cmpi slt, %5, %6 : vector<16x128xi32>
    %8 = vector.broadcast %4 : vector<16x1xf32> to vector<16x128xf32>
    %9 = arith.subf %0, %8 : vector<16x128xf32>
    %cst_2 = arith.constant 0.000000e+00 : f32
    %10 = vector.broadcast %cst_2 : f32 to vector<16x128xf32>
    %11 = arith.select %7, %9, %10 : vector<16x128xi1>, vector<16x128xf32>
    %12 = arith.mulf %11, %11 : vector<16x128xf32>
    %cst_3 = arith.constant dense<0.000000e+00> : vector<16xf32>
    %13 = vector.multi_reduction <add>, %12, %cst_3 [1] : vector<16x128xf32> to vector<16xf32>
    %14 = vector.shape_cast %13 : vector<16xf32> to vector<16x1xf32>
    %cst_4 = arith.constant 3.125000e-02 : f32
    %15 = vector.broadcast %cst_4 : f32 to vector<16x1xf32>
    %16 = arith.mulf %14, %15 : vector<16x1xf32>
    %cst_5 = arith.constant 9.99999974E-6 : f32
    %17 = vector.broadcast %cst_5 : f32 to vector<16x1xf32>
    %18 = arith.addf %16, %17 : vector<16x1xf32>
    %19 = math.rsqrt %18 : vector<16x1xf32>
    %20 = vector.broadcast %19 : vector<16x1xf32> to vector<16x128xf32>
    %21 = arith.mulf %11, %20 : vector<16x128xf32>
    %c0_6 = arith.constant 0 : index
    %c0_7 = arith.constant 0 : index
    %22 = vector.load %arg2[%c0_6, %c0_7] : memref<1x128xf32, #tpu.memory_space<vmem>>, vector<1x128xf32>
    %23 = vector.broadcast %22 : vector<1x128xf32> to vector<16x128xf32>
    %24 = arith.mulf %21, %23 : vector<16x128xf32>
    %c0_8 = arith.constant 0 : index
    %c0_9 = arith.constant 0 : index
    %25 = vector.load %arg3[%c0_8, %c0_9] : memref<1x128xf32, #tpu.memory_space<vmem>>, vector<1x128xf32>
    %26 = vector.broadcast %25 : vector<1x128xf32> to vector<16x128xf32>
    %27 = arith.addf %24, %26 : vector<16x128xf32>
    %28 = arith.truncf %27 : vector<16x128xf32> to vector<16x128xbf16>
    %c0_10 = arith.constant 0 : index
    %c0_11 = arith.constant 0 : index
    %29 = vector.load %arg4[%c0_10, %c0_11] : memref<128x128xbf16, #tpu.memory_space<vmem>>, vector<128x128xbf16>
    %cst_12 = arith.constant dense<0.000000e+00> : vector<16x128xf32>
    %30 = tpu.matmul %28, %29, %cst_12 {dimension_numbers = #tpu.dot_dimension_numbers<[1], [0], [0], [1], [0, 0, 1, 1], [], []>} : vector<16x128xbf16>, vector<128x128xbf16>, vector<16x128xf32> -> vector<16x128xf32>
    %c0_13 = arith.constant 0 : index
    %c0_14 = arith.constant 0 : index
    %31 = vector.load %arg5[%c0_13, %c0_14] : memref<1x128xf32, #tpu.memory_space<vmem>>, vector<1x128xf32>
    %32 = vector.broadcast %31 : vector<1x128xf32> to vector<16x128xf32>
    %33 = arith.addf %30, %32 : vector<16x128xf32>
    %c0_15 = arith.constant 0 : index
    %c0_16 = arith.constant 0 : index
    %34 = vector.load %arg6[%c0_15, %c0_16] : memref<16x128xf32, #tpu.memory_space<vmem>>, vector<16x128xf32>
    tpu.vector_store %arg6[%c0_15, %c0_16], %33 {strides = array<i32>} : memref<16x128xf32, #tpu.memory_space<vmem>>, vector<16x128xf32>,
    return
  }
  func.func @transform_0(%arg0: i32) -> (i32, i32) {
    %c0_i32 = arith.constant 0 : i32
    %c0_i32_0 = arith.constant 0 : i32
    return %arg0, %c0_i32 : i32, i32
  }
  func.func @transform_1(%arg0: i32) -> (i32, i32) {
    %c0_i32 = arith.constant 0 : i32
    %c0_i32_0 = arith.constant 0 : i32
    %c0_i32_1 = arith.constant 0 : i32
    return %c0_i32, %c0_i32_0 : i32, i32
  }
  func.func @transform_2(%arg0: i32) -> (i32, i32) {
    %c0_i32 = arith.constant 0 : i32
    %c0_i32_0 = arith.constant 0 : i32
    %c0_i32_1 = arith.constant 0 : i32
    return %c0_i32, %c0_i32_0 : i32, i32
  }
  func.func @transform_3(%arg0: i32) -> (i32, i32) {
    %c0_i32 = arith.constant 0 : i32
    %c0_i32_0 = arith.constant 0 : i32
    %c0_i32_1 = arith.constant 0 : i32
    return %c0_i32, %c0_i32_0 : i32, i32
  }
  func.func @transform_4(%arg0: i32) -> (i32, i32) {
    %c0_i32 = arith.constant 0 : i32
    %c0_i32_0 = arith.constant 0 : i32
    %c0_i32_1 = arith.constant 0 : i32
    return %c0_i32, %c0_i32_0 : i32, i32
  }
  func.func @transform_5(%arg0: i32) -> (i32, i32) {
    %c0_i32 = arith.constant 0 : i32
    %c0_i32_0 = arith.constant 0 : i32
    return %arg0, %c0_i32 : i32, i32
  }
}

</mosaic_0001>

<llo_original>
// kernel: tpu_custom_call.1
$region0: #{tpu_custom_call.1}
  #allocation0 [shape = 'u32[]', space=smem, size = 0x4, offset = 0x4, fixed_abs, tag = 'smem constant byte address 0x4 - core index']
  #allocation1 [shape = 'u32[144,128]{1,0:T(1,128)}', space=vmem, size = 0x12000, scoped, tag = 'internal scratch']
  %s0 = inlined_call_operand.hbm [shape: f32[16,128], index: 0, kind: input, shape index: {}]
  %s1 = inlined_call_operand.vmem [shape: f32[1,128], index: 1, kind: input, shape index: {}]
  %s2 = inlined_call_operand.vmem [shape: f32[1,128], index: 2, kind: input, shape index: {}]
  %s3 = inlined_call_operand.hbm [shape: bf16[128,128], index: 3, kind: input, shape index: {}]
  %s4 = inlined_call_operand.vmem [shape: f32[1,128], index: 4, kind: input, shape index: {}]
  %s5 = inlined_call_operand.hbm [shape: f32[16,128], index: 5, kind: output, shape index: {}]
  %s6 = sld [smem:[#allocation0]]
  $region38: #{tpu_custom_call.1} parent=0
    _
  %s8 = ssub.s32 1, %s6
  %s9 = scalar_select 0, %s8, %s6
  $region1: #{tpu_custom_call.1} parent=0
    #allocation2 [shape = 'u8[8192]{0}', space=vmem, size = 0x2000, scoped, tag = 'input window, operand 0, single buffered']
    #allocation3 [shape = 's32[1]{0}', space=sflag, size = 0x4, scoped, tag = 'scoped memory for tpu_custom_call.1']
    #allocation4 [shape = 's32[1]{0}', space=sflag, size = 0x4, scoped, tag = 'scoped memory for tpu_custom_call.1']
    #allocation5 [shape = 'u8[32768]{0}', space=vmem, size = 0x8000, scoped, tag = 'input window, operand 3, single buffered']
    #allocation6 [shape = 's32[1]{0}', space=sflag, size = 0x4, scoped, tag = 'scoped memory for tpu_custom_call.1']
    #allocation7 [shape = 'u8[8192]{0}', space=vmem, size = 0x2000, scoped, tag = 'output window, operand 0, single buffered']
    %10 = vsyncpa [#allocation3], 0
    %11 = vsyncpa [#allocation6], 0
    %12 = vsyncpa [#allocation4], 0
    // Predicated region
    $region2: #{tpu_custom_call.1} parent=1 // pred_check
      _
    $region3: #{tpu_custom_call.1} parent=1 // pred_check_branch
      %14 = sbr.rel (0) target = $region5
    $region4: #{tpu_custom_call.1} parent=1 // pred_region
      %s16 = ssub.s32 256, 256
      %17 = vsyncadd [#allocation3], %s16
      %s18 = sshll.u32 [#allocation2], 4
      %s19 = int_to_ptr.vmem [resolvable:$true] %s18
      %24 = dma.hbm_to_vmem [thread:$0]  %s0, 256, %s19, [#allocation3], 128, 128, 8
    $region5: #{tpu_custom_call.1} parent=1 // pred_fallthru
      _
    // Predicated region
    $region6: #{tpu_custom_call.1} parent=1 // pred_check
      _
    $region7: #{tpu_custom_call.1} parent=1 // pred_check_branch
      %26 = sbr.rel (0) target = $region9
    $region8: #{tpu_custom_call.1} parent=1 // pred_region
      _
    $region9: #{tpu_custom_call.1} parent=1 // pred_fallthru
      _
    // Predicated region
    $region10: #{tpu_custom_call.1} parent=1 // pred_check
      _
    $region11: #{tpu_custom_call.1} parent=1 // pred_check_branch
      %28 = sbr.rel (0) target = $region13
    $region12: #{tpu_custom_call.1} parent=1 // pred_region
      _
    $region13: #{tpu_custom_call.1} parent=1 // pred_fallthru
      _
    // Predicated region
    $region14: #{tpu_custom_call.1} parent=1 // pred_check
      _
    $region15: #{tpu_custom_call.1} parent=1 // pred_check_branch
      %30 = sbr.rel (0) target = $region17
    $region16: #{tpu_custom_call.1} parent=1 // pred_region
      %s32 = ssub.s32 1024, 1024
      %33 = vsyncadd [#allocation6], %s32
      %s34 = sshll.u32 [#allocation5], 4
      %s35 = int_to_ptr.vmem [resolvable:$true] %s34
      %40 = dma.hbm_to_vmem [thread:$0]  %s3, 1024, %s35, [#allocation6], 64, 64, 4
    $region17: #{tpu_custom_call.1} parent=1 // pred_fallthru
      _
    // Predicated region
    $region18: #{tpu_custom_call.1} parent=1 // pred_check
      _
    $region19: #{tpu_custom_call.1} parent=1 // pred_check_branch
      %42 = sbr.rel (0) target = $region21
    $region20: #{tpu_custom_call.1} parent=1 // pred_region
      _
    $region21: #{tpu_custom_call.1} parent=1 // pred_fallthru
      _
    // Predicated region
    $region22: #{tpu_custom_call.1} parent=1 // pred_check
      _
    $region23: #{tpu_custom_call.1} parent=1 // pred_check_branch
      %44 = sbr.rel (0) target = $region25
    $region24: #{tpu_custom_call.1} parent=1 // pred_region
      %45 = dma.done [#allocation3], 256
    $region25: #{tpu_custom_call.1} parent=1 // pred_fallthru
      _
    // Predicated region
    $region26: #{tpu_custom_call.1} parent=1 // pred_check
      _
    $region27: #{tpu_custom_call.1} parent=1 // pred_check_branch
      %47 = sbr.rel (0) target = $region29
    $region28: #{tpu_custom_call.1} parent=1 // pred_region
      %48 = dma.done [#allocation6], 1024
    $region29: #{tpu_custom_call.1} parent=1 // pred_fallthru
      _
    %v50 = vld [vmem:[#allocation2] sm:$0xff]
    %v51 = vld [vmem:[#allocation2 + $0x8] sm:$0xff]
    %52 = vadd.xlane.f32.xlu0 %v50
    %v53 = vpop.xlane.xlu0 %52
    %54 = vadd.xlane.f32.xlu0 %v51
    %v55 = vpop.xlane.xlu0 %54
    %v56 = vmul.f32 %v53, 0.03125
    %v57 = vmul.f32 %v55, 0.03125
    %v58 = vlaneseq
    %v59 = vand.u32 %v58, 127
    %vm60 = vcmp.lt.s32.totalorder %v59, 32
    %v61 = vsub.f32 %v50, %v56
    %v62 = vsub.f32 %v51, %v57
    %v63 = vsel %vm60, %v61, 0.0
    %v64 = vsel %vm60, %v62, 0.0
    %v65 = vmul.f32 %v63, %v63
    %v66 = vmul.f32 %v64, %v64
    %67 = vadd.xlane.f32.xlu0 %v65
    %v68 = vpop.xlane.xlu0 %67
    %69 = vadd.xlane.f32.xlu0 %v66
    %v70 = vpop.xlane.xlu0 %69
    %v71 = vmul.f32 %v68, 0.03125
    %v72 = vmul.f32 %v70, 0.03125
    %v73 = vadd.f32 %v71, 1e-05
    %v74 = vadd.f32 %v72, 1e-05
    %v75 = vrsqrt.pop %v73
    %v76 = vrsqrt.pop %v74
    %v77 = vmul.f32 %v63, %v75
    %v78 = vmul.f32 %v64, %v76
    %v79 = vld [vmem:[%s1] sm:$0x1]
    %v81 = vlaneseq
    %v82 = vshrl.u32 %v81, 7
    %v83 = vsub.s32 0, %v82
    %v84 = vrot.slane %v79, %v83
    %v86 = vmul.f32 %v77, %v84
    %v87 = vmul.f32 %v78, %v84
    %v88 = vld [vmem:[%s2] sm:$0x1]
    %v90 = vlaneseq
    %v91 = vshrl.u32 %v90, 7
    %v92 = vsub.s32 0, %v91
    %v93 = vrot.slane %v88, %v92
    %v95 = vadd.f32 %v86, %v93
    %v96 = vadd.f32 %v87, %v93
    %v97 = vpack.c.bf16 %v96, %v95
    %v98 = vld [vmem:[#allocation5] sm:$0xf]
    %v99 = vld [vmem:[#allocation5 + $0x4] sm:$0xf]
    %v100 = vld [vmem:[#allocation5 + $0x8] sm:$0xf]
    %v101 = vld [vmem:[#allocation5 + $0xc] sm:$0xf]
    %v102 = vld [vmem:[#allocation5 + $0x10] sm:$0xf]
    %v103 = vld [vmem:[#allocation5 + $0x14] sm:$0xf]
    %v104 = vld [vmem:[#allocation5 + $0x18] sm:$0xf]
    %v105 = vld [vmem:[#allocation5 + $0x1c] sm:$0xf]
    %v106 = vld [vmem:[#allocation5 + $0x20] sm:$0xf]
    %v107 = vld [vmem:[#allocation5 + $0x24] sm:$0xf]
    %v108 = vld [vmem:[#allocation5 + $0x28] sm:$0xf]
    %v109 = vld [vmem:[#allocation5 + $0x2c] sm:$0xf]
    %v110 = vld [vmem:[#allocation5 + $0x30] sm:$0xf]
    %v111 = vld [vmem:[#allocation5 + $0x34] sm:$0xf]
    %v112 = vld [vmem:[#allocation5 + $0x38] sm:$0xf]
    %v113 = vld [vmem:[#allocation5 + $0x3c] sm:$0xf]
    %v114 = vld [vmem:[%s4] sm:$0x1]
    %v116 = vlaneseq
    %v117 = vshrl.u32 %v116, 7
    %v118 = vsub.s32 0, %v117
    %v119 = vrot.slane %v114, %v118
    %v137 = vunpack.c.l.b16 %v98
    %v138 = vunpack.c.l.b16 %v99
    %v139 = vunpack.c.l.b16 %v100
    %v140 = vunpack.c.l.b16 %v101
    %v141 = vunpack.c.l.b16 %v102
    %v142 = vunpack.c.l.b16 %v103
    %v143 = vunpack.c.l.b16 %v104
    %v144 = vunpack.c.l.b16 %v105
    %v145 = vunpack.c.l.b16 %v106
    %v146 = vunpack.c.l.b16 %v107
    %v147 = vunpack.c.l.b16 %v108
    %v148 = vunpack.c.l.b16 %v109
    %v149 = vunpack.c.l.b16 %v110
    %v150 = vunpack.c.l.b16 %v111
    %v151 = vunpack.c.l.b16 %v112
    %v152 = vunpack.c.l.b16 %v113
    %v153 = vpack.c.b16 %v138, %v137
    %v154 = vpack.c.b16 %v140, %v139
    %v155 = vpack.c.b16 %v142, %v141
    %v156 = vpack.c.b16 %v144, %v143
    %v157 = vpack.c.b16 %v146, %v145
    %v158 = vpack.c.b16 %v148, %v147
    %v159 = vpack.c.b16 %v150, %v149
    %v160 = vpack.c.b16 %v152, %v151
    %169 = vmatprep.subr.bf16.mxu0 0
    %170 = vmatpush1.bf16.msra.mxu0 %v160
    %171 = vmatprep.subr.bf16.mxu0 0
    %172 = vmatpush1.bf16.msra.mxu0 %v159
    %173 = vmatprep.subr.bf16.mxu0 0
    %174 = vmatpush1.bf16.msra.mxu0 %v158
    %175 = vmatprep.subr.bf16.mxu0 0
    %176 = vmatpush1.bf16.msra.mxu0 %v157
    %177 = vmatprep.subr.bf16.mxu0 0
    %178 = vmatpush1.bf16.msra.mxu0 %v156
    %179 = vmatprep.subr.bf16.mxu0 0
    %180 = vmatpush1.bf16.msra.mxu0 %v155
    %181 = vmatprep.subr.bf16.mxu0 0
    %182 = vmatpush1.bf16.msra.mxu0 %v154
    %183 = vmatprep.subr.bf16.mxu0 0
    %184 = vmatpush1.bf16.msra.mxu0 %v153
    %185 = vmatprep.subr.bf16.mxu0 0
    %186 = vmatpush2.bf16.msra.mxu0 0
    %187 = vmatprep.subr.bf16.mxu0 0
    %188 = vmatpush2.bf16.msra.mxu0 0
    %189 = vmatprep.subr.bf16.mxu0 0
    %190 = vmatpush2.bf16.msra.mxu0 0
    %191 = vmatprep.subr.bf16.mxu0 0
    %192 = vmatpush2.bf16.msra.mxu0 0
    %193 = vmatprep.subr.bf16.mxu0 0
    %194 = vmatpush2.bf16.msra.mxu0 0
    %195 = vmatprep.subr.bf16.mxu0 0
    %196 = vmatpush2.bf16.msra.mxu0 0
    %197 = vmatprep.subr.bf16.mxu0 0
    %198 = vmatpush2.bf16.msra.mxu0 0
    %199 = vmatprep.subr.bf16.mxu0 0
    %200 = vmatpush2.bf16.msra.mxu0 0
    %201 = vmatprep.mubr.bf16.mxu0 0
    %202 = vmatmul.mubr.bf16.gmra.mxu0 %v97
    %v203 = vpop.f32.mrf.mxu0
    %v204 = vadd.f32 %v119, %v203
    %v205 = vpop.f32.mrf.mxu0
    %v206 = vpop.f32.mrf.mxu0
    %v207 = vadd.f32 %v119, %v206
    %v208 = vpop.f32.mrf.mxu0
    %209 = vdwg.mxu0
    %210 = vst [vmem:[#allocation7] sm:$0xff] %v204
    %211 = vst [vmem:[#allocation7 + $0x8] sm:$0xff] %v207
    // Predicated region
    $region30: #{tpu_custom_call.1} parent=1 // pred_check
      _
    $region31: #{tpu_custom_call.1} parent=1 // pred_check_branch
      %213 = sbr.rel (0) target = $region33
    $region32: #{tpu_custom_call.1} parent=1 // pred_region
      %s215 = ssub.s32 256, 256
      %216 = vsyncadd [#allocation4], %s215
      %s217 = sshll.u32 [#allocation7], 4
      %s218 = int_to_ptr.vmem [resolvable:$true] %s217
      %223 = dma.vmem_to_hbm [thread:$0]  %s218, 256, %s5, [#allocation4], 128, 128, 8
    $region33: #{tpu_custom_call.1} parent=1 // pred_fallthru
      _
    // Predicated region
    $region34: #{tpu_custom_call.1} parent=1 // pred_check
      _
    $region35: #{tpu_custom_call.1} parent=1 // pred_check_branch
      %225 = sbr.rel (0) target = $region37
    $region36: #{tpu_custom_call.1} parent=1 // pred_region
      %226 = dma.done [#allocation4], 256
    $region37: #{tpu_custom_call.1} parent=1 // pred_fallthru
      _
    %227 = vsyncpa [#allocation3], 1
    %228 = vsyncpa [#allocation6], 1
    %229 = vsyncpa [#allocation4], 1

</llo_original>
